<compile_context>
chip_gen: v7x
topology: tpu7x:2x2x1
jax: 0.10.0
libtpu: 0.0.40
codegen_flags: <defaults>
</compile_context>

<pallas_src>
import jax
import jax.numpy as jnp
from jax import lax
from jax.experimental import pallas as pl
from jax.experimental.pallas import tpu as pltpu

_CHUNK = 8  # sublane rows per strip: one (8, 128) f32 vreg per channel


def _fn_kernel(w_ref, b_ref, x_ref, out_ref, sqpart_ref):
    """One grid step: one (1, C, rt, 128) tile (spatial axis on sublanes+lanes).

    w_ref:      (C, C)           SMEM  channel-last linear weight
    b_ref:      (1, C)           SMEM  linear bias
    x_ref:      (1, C, rt, 128)  VMEM  input tile
    out_ref:    (1, C, rt, 128)  VMEM  output tile
    sqpart_ref: (1, 1, 8, 128)   VMEM  per-block partial sum of out**2
    """
    C = x_ref.shape[1]
    rt = x_ref.shape[2]
    n_chunks = rt // _CHUNK  # rt is always a multiple of _CHUNK

    # Hoist the (tiny) SMEM scalar reads out of the strip loop.
    wv = [[w_ref[c, d] for d in range(C)] for c in range(C)]
    bv = [b_ref[0, d] for d in range(C)]

    def strip(r0, sq):
        # Load each input-channel strip once: dense (8, 128) slabs.
        xs = [x_ref[0, c, pl.ds(r0, _CHUNK), :].astype(jnp.float32)
              for c in range(C)]
        # TODO(synk): for bf16 inputs on v6e/v7x the FMAs could stay in bf16;
        #             f32 is kept (inputs here are f32; v5e has no bf16 VALU).
        for d in range(C):
            y = xs[0] * wv[0][d]
            for c in range(1, C):
                y = y + xs[c] * wv[c][d]      # scalar-broadcast VPU FMA
            y = y + bv[d]
            out_ref[0, d, pl.ds(r0, _CHUNK), :] = y.astype(out_ref.dtype)
            sq = sq + y * y                   # pure-VALU partial, no XLU
        return sq

    init = jnp.zeros((_CHUNK, 128), jnp.float32)
    if n_chunks == 1:
        sq = strip(0, init)
    else:
        def body(i, sq):
            return strip(pl.multiple_of(i * _CHUNK, _CHUNK), sq)
        sq = lax.fori_loop(0, n_chunks, body, init, unroll=min(n_chunks, 4))

    sqpart_ref[0, 0, :, :] = sq


def _choose_tiling(hw, c, itemsize, batch,
                   target_bytes=4 << 20, vmem_budget=32 << 20):
    """Pick (rows-per-block rt, padded rows) for the (B, C, rows, 128) layout."""
    rows = -(-hw // 128)                     # ceil(hw / 128) lane-rows
    bytes_per_row = c * 128 * itemsize
    # ~4 MiB of input per block, rounded down to a sublane multiple.
    rt = max(8, (target_bytes // bytes_per_row) // 8 * 8)
    # VMEM safety: x + out blocks, double-buffered (4 block-sized buffers).
    rt = min(rt, max(8, (vmem_budget // (4 * bytes_per_row)) // 8 * 8))
    # Never tile beyond the (sublane-rounded) data.
    rt = min(rt, -(-rows // 8) * 8)
    # v7x has 2 TensorCores: keep >= 2 parallel grid blocks when batch == 1.
    if batch == 1 and rows > 8:
        rt = min(rt, max(8, -(-rows // 16) * 8))
    rows_pad = -(-rows // rt) * rt
    return rt, rows_pad


def permute_to_from(x_nchw, w, b):
    """PermuteToFrom.forward (fused, NCHW in / NCHW out). Returns (out, loss)."""
    B, C, H, W = x_nchw.shape
    hw = H * W
    rt, rows_pad = _choose_tiling(hw, C, x_nchw.dtype.itemsize, B)
    hw_pad = rows_pad * 128
    n_blocks = rows_pad // rt

    x3 = x_nchw.reshape(B, C, hw)
    if hw_pad != hw:
        # Zero-pad the flattened spatial axis.  Padded pixels produce
        # out == bias exactly; their loss contribution is subtracted below.
        x3 = jnp.pad(x3, ((0, 0), (0, 0), (0, hw_pad - hw)))
    x4 = x3.reshape(B, C, rows_pad, 128)

    block_bytes = C * rt * 128 * x_nchw.dtype.itemsize
    # x + out blocks, double-buffered, plus margin; <= 48 MiB so v7x (64 MiB
    # physical VMEM) never thrashes; v5e/v6e (128 MiB) are trivially fine.
    vmem_limit = int(min(48 << 20, max(16 << 20, 4 * block_bytes + (4 << 20))))

    out4, sqpart = pl.pallas_call(
        _fn_kernel,
        out_shape=(
            jax.ShapeDtypeStruct((B, C, rows_pad, 128), x_nchw.dtype),
            jax.ShapeDtypeStruct((B, n_blocks, 8, 128), jnp.float32),
        ),
        grid_spec=pltpu.PrefetchScalarGridSpec(
            num_scalar_prefetch=0,
            grid=(B, n_blocks),
            in_specs=[
                pl.BlockSpec(memory_space=pltpu.MemorySpace.SMEM),     # weight
                pl.BlockSpec(memory_space=pltpu.MemorySpace.SMEM),     # bias
                pl.BlockSpec((1, C, rt, 128), lambda bi, j: (bi, 0, j, 0)),
            ],
            out_specs=[
                pl.BlockSpec((1, C, rt, 128), lambda bi, j: (bi, 0, j, 0)),
                pl.BlockSpec((1, 1, 8, 128), lambda bi, j: (bi, j, 0, 0)),
            ],
        ),
        compiler_params=pltpu.CompilerParams(
            dimension_semantics=("parallel", "parallel"),  # no resident accum
            vmem_limit_bytes=vmem_limit,
        ),
    )(w, b, x4)

    out = out4.reshape(B, C, hw_pad)
    if hw_pad != hw:
        out = out[:, :, :hw]
    out = out.reshape(B, C, H, W)

    total_sq = jnp.sum(sqpart)
    if hw_pad != hw:
        # Exact correction: each of the B*(hw_pad-hw) padded pixels contributed
        # sum_d bias[d]**2 to the kernel's sum of squares.
        pad_sq = jnp.sum(jnp.square(b.astype(jnp.float32)))
        total_sq = total_sq - jnp.float32(B * (hw_pad - hw)) * pad_sq
    loss = total_sq / jnp.float32(B * C * hw)
    return out, loss


def _reference(x_nchw, w, b):
    x_nhwc = jnp.transpose(x_nchw, (0, 2, 3, 1))
    out = jnp.einsum("bhwc,cd->bhwd", x_nhwc, w) + b[0]
    loss = jnp.mean(out * out)
    return jnp.transpose(out, (0, 3, 1, 2)), loss


if __name__ == "__main__":
    B, C, H, W = 2, 4, 16, 16

    key = jax.random.PRNGKey(0)
    kx, kw, kb = jax.random.split(key, 3)
    x = jax.random.normal(kx, (B, C, H, W), dtype=jnp.float32)
    # deterministic "fn" parameters (channel-last linear C -> C)
    w = jax.random.normal(kw, (C, C), dtype=jnp.float32) * 0.1
    b = jax.random.normal(kb, (1, C), dtype=jnp.float32) * 0.1

    out, loss = jax.jit(permute_to_from)(x, w, b)
    out = jax.block_until_ready(out)
    loss = jax.block_until_ready(loss)

    out_ref, loss_ref = _reference(x, w, b)
    assert out.shape == (B, C, H, W)
    assert jnp.allclose(out, out_ref, atol=1e-5, rtol=1e-5)
    assert jnp.allclose(loss, loss_ref, atol=1e-5, rtol=1e-5)

    print("KERNEL_OK")
</pallas_src>

<mosaic_0001>
module attributes {stable_mosaic.version = 11 : i64} {
  func.func @_fn_kernel(%arg0: i32, %arg1: i32, %arg2: memref<4x4xf32, #tpu.memory_space<smem>>, %arg3: memref<1x4xf32, #tpu.memory_space<smem>>, %arg4: memref<1x4x8x128xf32, #tpu.memory_space<vmem>>, %arg5: memref<1x4x8x128xf32, #tpu.memory_space<vmem>>, %arg6: memref<1x1x8x128xf32, #tpu.memory_space<vmem>>) attributes {dimension_semantics = [#tpu.dimension_semantics<parallel>, #tpu.dimension_semantics<parallel>], iteration_bounds = array<i64: 2, 1>, scalar_prefetch = 0 : i64, scratch_operands = 0 : i64, tpu.core_type = #tpu.core_type<tc>, window_params = [{transform_indices = @transform_0, window_bounds = array<i64: 4, 4>}, {transform_indices = @transform_1, window_bounds = array<i64: 1, 4>}, {transform_indices = @transform_2, window_bounds = array<i64: 1, 4, 8, 128>}, {transform_indices = @transform_3, window_bounds = array<i64: 1, 4, 8, 128>}, {transform_indices = @transform_4, window_bounds = array<i64: 1, 1, 8, 128>}]} {
    %c0 = arith.constant 0 : index
    %c0_0 = arith.constant 0 : index
    %0 = memref.load %arg2[%c0, %c0_0] : memref<4x4xf32, #tpu.memory_space<smem>>
    %c0_1 = arith.constant 0 : index
    %c1 = arith.constant 1 : index
    %1 = memref.load %arg2[%c0_1, %c1] : memref<4x4xf32, #tpu.memory_space<smem>>
    %c0_2 = arith.constant 0 : index
    %c2 = arith.constant 2 : index
    %2 = memref.load %arg2[%c0_2, %c2] : memref<4x4xf32, #tpu.memory_space<smem>>
    %c0_3 = arith.constant 0 : index
    %c3 = arith.constant 3 : index
    %3 = memref.load %arg2[%c0_3, %c3] : memref<4x4xf32, #tpu.memory_space<smem>>
    %c1_4 = arith.constant 1 : index
    %c0_5 = arith.constant 0 : index
    %4 = memref.load %arg2[%c1_4, %c0_5] : memref<4x4xf32, #tpu.memory_space<smem>>
    %c1_6 = arith.constant 1 : index
    %c1_7 = arith.constant 1 : index
    %5 = memref.load %arg2[%c1_6, %c1_7] : memref<4x4xf32, #tpu.memory_space<smem>>
    %c1_8 = arith.constant 1 : index
    %c2_9 = arith.constant 2 : index
    %6 = memref.load %arg2[%c1_8, %c2_9] : memref<4x4xf32, #tpu.memory_space<smem>>
    %c1_10 = arith.constant 1 : index
    %c3_11 = arith.constant 3 : index
    %7 = memref.load %arg2[%c1_10, %c3_11] : memref<4x4xf32, #tpu.memory_space<smem>>
    %c2_12 = arith.constant 2 : index
    %c0_13 = arith.constant 0 : index
    %8 = memref.load %arg2[%c2_12, %c0_13] : memref<4x4xf32, #tpu.memory_space<smem>>
    %c2_14 = arith.constant 2 : index
    %c1_15 = arith.constant 1 : index
    %9 = memref.load %arg2[%c2_14, %c1_15] : memref<4x4xf32, #tpu.memory_space<smem>>
    %c2_16 = arith.constant 2 : index
    %c2_17 = arith.constant 2 : index
    %10 = memref.load %arg2[%c2_16, %c2_17] : memref<4x4xf32, #tpu.memory_space<smem>>
    %c2_18 = arith.constant 2 : index
    %c3_19 = arith.constant 3 : index
    %11 = memref.load %arg2[%c2_18, %c3_19] : memref<4x4xf32, #tpu.memory_space<smem>>
    %c3_20 = arith.constant 3 : index
    %c0_21 = arith.constant 0 : index
    %12 = memref.load %arg2[%c3_20, %c0_21] : memref<4x4xf32, #tpu.memory_space<smem>>
    %c3_22 = arith.constant 3 : index
    %c1_23 = arith.constant 1 : index
    %13 = memref.load %arg2[%c3_22, %c1_23] : memref<4x4xf32, #tpu.memory_space<smem>>
    %c3_24 = arith.constant 3 : index
    %c2_25 = arith.constant 2 : index
    %14 = memref.load %arg2[%c3_24, %c2_25] : memref<4x4xf32, #tpu.memory_space<smem>>
    %c3_26 = arith.constant 3 : index
    %c3_27 = arith.constant 3 : index
    %15 = memref.load %arg2[%c3_26, %c3_27] : memref<4x4xf32, #tpu.memory_space<smem>>
    %c0_28 = arith.constant 0 : index
    %c0_29 = arith.constant 0 : index
    %16 = memref.load %arg3[%c0_28, %c0_29] : memref<1x4xf32, #tpu.memory_space<smem>>
    %c0_30 = arith.constant 0 : index
    %c1_31 = arith.constant 1 : index
    %17 = memref.load %arg3[%c0_30, %c1_31] : memref<1x4xf32, #tpu.memory_space<smem>>
    %c0_32 = arith.constant 0 : index
    %c2_33 = arith.constant 2 : index
    %18 = memref.load %arg3[%c0_32, %c2_33] : memref<1x4xf32, #tpu.memory_space<smem>>
    %c0_34 = arith.constant 0 : index
    %c3_35 = arith.constant 3 : index
    %19 = memref.load %arg3[%c0_34, %c3_35] : memref<1x4xf32, #tpu.memory_space<smem>>
    %cst = arith.constant 0.000000e+00 : f32
    %20 = vector.broadcast %cst : f32 to vector<8x128xf32>
    %c0_36 = arith.constant 0 : index
    %c0_37 = arith.constant 0 : index
    %c0_38 = arith.constant 0 : index
    %c0_39 = arith.constant 0 : index
    %21 = vector.load %arg4[%c0_36, %c0_37, %c0_38, %c0_39] : memref<1x4x8x128xf32, #tpu.memory_space<vmem>>, vector<1x1x8x128xf32>
    %22 = vector.shape_cast %21 : vector<1x1x8x128xf32> to vector<8x128xf32>
    %c0_40 = arith.constant 0 : index
    %c1_41 = arith.constant 1 : index
    %c0_42 = arith.constant 0 : index
    %c0_43 = arith.constant 0 : index
    %23 = vector.load %arg4[%c0_40, %c1_41, %c0_42, %c0_43] : memref<1x4x8x128xf32, #tpu.memory_space<vmem>>, vector<1x1x8x128xf32>
    %24 = vector.shape_cast %23 : vector<1x1x8x128xf32> to vector<8x128xf32>
    %c0_44 = arith.constant 0 : index
    %c2_45 = arith.constant 2 : index
    %c0_46 = arith.constant 0 : index
    %c0_47 = arith.constant 0 : index
    %25 = vector.load %arg4[%c0_44, %c2_45, %c0_46, %c0_47] : memref<1x4x8x128xf32, #tpu.memory_space<vmem>>, vector<1x1x8x128xf32>
    %26 = vector.shape_cast %25 : vector<1x1x8x128xf32> to vector<8x128xf32>
    %c0_48 = arith.constant 0 : index
    %c3_49 = arith.constant 3 : index
    %c0_50 = arith.constant 0 : index
    %c0_51 = arith.constant 0 : index
    %27 = vector.load %arg4[%c0_48, %c3_49, %c0_50, %c0_51] : memref<1x4x8x128xf32, #tpu.memory_space<vmem>>, vector<1x1x8x128xf32>
    %28 = vector.shape_cast %27 : vector<1x1x8x128xf32> to vector<8x128xf32>
    %29 = vector.broadcast %0 : f32 to vector<8x128xf32>
    %30 = arith.mulf %22, %29 : vector<8x128xf32>
    %31 = vector.broadcast %4 : f32 to vector<8x128xf32>
    %32 = arith.mulf %24, %31 : vector<8x128xf32>
    %33 = arith.addf %30, %32 : vector<8x128xf32>
    %34 = vector.broadcast %8 : f32 to vector<8x128xf32>
    %35 = arith.mulf %26, %34 : vector<8x128xf32>
    %36 = arith.addf %33, %35 : vector<8x128xf32>
    %37 = vector.broadcast %12 : f32 to vector<8x128xf32>
    %38 = arith.mulf %28, %37 : vector<8x128xf32>
    %39 = arith.addf %36, %38 : vector<8x128xf32>
    %40 = vector.broadcast %16 : f32 to vector<8x128xf32>
    %41 = arith.addf %39, %40 : vector<8x128xf32>
    %c0_52 = arith.constant 0 : index
    %c0_53 = arith.constant 0 : index
    %c0_54 = arith.constant 0 : index
    %c0_55 = arith.constant 0 : index
    %42 = vector.load %arg5[%c0_52, %c0_53, %c0_54, %c0_55] : memref<1x4x8x128xf32, #tpu.memory_space<vmem>>, vector<1x1x8x128xf32>
    %43 = vector.shape_cast %42 : vector<1x1x8x128xf32> to vector<8x128xf32>
    %44 = vector.shape_cast %41 : vector<8x128xf32> to vector<1x1x8x128xf32>
    tpu.vector_store %arg5[%c0_52, %c0_53, %c0_54, %c0_55], %44 {strides = array<i32>} : memref<1x4x8x128xf32, #tpu.memory_space<vmem>>, vector<1x1x8x128xf32>,
    %45 = arith.mulf %41, %41 : vector<8x128xf32>
    %46 = arith.addf %20, %45 : vector<8x128xf32>
    %47 = vector.broadcast %1 : f32 to vector<8x128xf32>
    %48 = arith.mulf %22, %47 : vector<8x128xf32>
    %49 = vector.broadcast %5 : f32 to vector<8x128xf32>
    %50 = arith.mulf %24, %49 : vector<8x128xf32>
    %51 = arith.addf %48, %50 : vector<8x128xf32>
    %52 = vector.broadcast %9 : f32 to vector<8x128xf32>
    %53 = arith.mulf %26, %52 : vector<8x128xf32>
    %54 = arith.addf %51, %53 : vector<8x128xf32>
    %55 = vector.broadcast %13 : f32 to vector<8x128xf32>
    %56 = arith.mulf %28, %55 : vector<8x128xf32>
    %57 = arith.addf %54, %56 : vector<8x128xf32>
    %58 = vector.broadcast %17 : f32 to vector<8x128xf32>
    %59 = arith.addf %57, %58 : vector<8x128xf32>
    %c0_56 = arith.constant 0 : index
    %c1_57 = arith.constant 1 : index
    %c0_58 = arith.constant 0 : index
    %c0_59 = arith.constant 0 : index
    %60 = vector.load %arg5[%c0_56, %c1_57, %c0_58, %c0_59] : memref<1x4x8x128xf32, #tpu.memory_space<vmem>>, vector<1x1x8x128xf32>
    %61 = vector.shape_cast %60 : vector<1x1x8x128xf32> to vector<8x128xf32>
    %62 = vector.shape_cast %59 : vector<8x128xf32> to vector<1x1x8x128xf32>
    tpu.vector_store %arg5[%c0_56, %c1_57, %c0_58, %c0_59], %62 {strides = array<i32>} : memref<1x4x8x128xf32, #tpu.memory_space<vmem>>, vector<1x1x8x128xf32>,
    %63 = arith.mulf %59, %59 : vector<8x128xf32>
    %64 = arith.addf %46, %63 : vector<8x128xf32>
    %65 = vector.broadcast %2 : f32 to vector<8x128xf32>
    %66 = arith.mulf %22, %65 : vector<8x128xf32>
    %67 = vector.broadcast %6 : f32 to vector<8x128xf32>
    %68 = arith.mulf %24, %67 : vector<8x128xf32>
    %69 = arith.addf %66, %68 : vector<8x128xf32>
    %70 = vector.broadcast %10 : f32 to vector<8x128xf32>
    %71 = arith.mulf %26, %70 : vector<8x128xf32>
    %72 = arith.addf %69, %71 : vector<8x128xf32>
    %73 = vector.broadcast %14 : f32 to vector<8x128xf32>
    %74 = arith.mulf %28, %73 : vector<8x128xf32>
    %75 = arith.addf %72, %74 : vector<8x128xf32>
    %76 = vector.broadcast %18 : f32 to vector<8x128xf32>
    %77 = arith.addf %75, %76 : vector<8x128xf32>
    %c0_60 = arith.constant 0 : index
    %c2_61 = arith.constant 2 : index
    %c0_62 = arith.constant 0 : index
    %c0_63 = arith.constant 0 : index
    %78 = vector.load %arg5[%c0_60, %c2_61, %c0_62, %c0_63] : memref<1x4x8x128xf32, #tpu.memory_space<vmem>>, vector<1x1x8x128xf32>
    %79 = vector.shape_cast %78 : vector<1x1x8x128xf32> to vector<8x128xf32>
    %80 = vector.shape_cast %77 : vector<8x128xf32> to vector<1x1x8x128xf32>
    tpu.vector_store %arg5[%c0_60, %c2_61, %c0_62, %c0_63], %80 {strides = array<i32>} : memref<1x4x8x128xf32, #tpu.memory_space<vmem>>, vector<1x1x8x128xf32>,
    %81 = arith.mulf %77, %77 : vector<8x128xf32>
    %82 = arith.addf %64, %81 : vector<8x128xf32>
    %83 = vector.broadcast %3 : f32 to vector<8x128xf32>
    %84 = arith.mulf %22, %83 : vector<8x128xf32>
    %85 = vector.broadcast %7 : f32 to vector<8x128xf32>
    %86 = arith.mulf %24, %85 : vector<8x128xf32>
    %87 = arith.addf %84, %86 : vector<8x128xf32>
    %88 = vector.broadcast %11 : f32 to vector<8x128xf32>
    %89 = arith.mulf %26, %88 : vector<8x128xf32>
    %90 = arith.addf %87, %89 : vector<8x128xf32>
    %91 = vector.broadcast %15 : f32 to vector<8x128xf32>
    %92 = arith.mulf %28, %91 : vector<8x128xf32>
    %93 = arith.addf %90, %92 : vector<8x128xf32>
    %94 = vector.broadcast %19 : f32 to vector<8x128xf32>
    %95 = arith.addf %93, %94 : vector<8x128xf32>
    %c0_64 = arith.constant 0 : index
    %c3_65 = arith.constant 3 : index
    %c0_66 = arith.constant 0 : index
    %c0_67 = arith.constant 0 : index
    %96 = vector.load %arg5[%c0_64, %c3_65, %c0_66, %c0_67] : memref<1x4x8x128xf32, #tpu.memory_space<vmem>>, vector<1x1x8x128xf32>
    %97 = vector.shape_cast %96 : vector<1x1x8x128xf32> to vector<8x128xf32>
    %98 = vector.shape_cast %95 : vector<8x128xf32> to vector<1x1x8x128xf32>
    tpu.vector_store %arg5[%c0_64, %c3_65, %c0_66, %c0_67], %98 {strides = array<i32>} : memref<1x4x8x128xf32, #tpu.memory_space<vmem>>, vector<1x1x8x128xf32>,
    %99 = arith.mulf %95, %95 : vector<8x128xf32>
    %100 = arith.addf %82, %99 : vector<8x128xf32>
    %c0_68 = arith.constant 0 : index
    %c0_69 = arith.constant 0 : index
    %c0_70 = arith.constant 0 : index
    %c0_71 = arith.constant 0 : index
    %101 = vector.load %arg6[%c0_68, %c0_69, %c0_70, %c0_71] : memref<1x1x8x128xf32, #tpu.memory_space<vmem>>, vector<1x1x8x128xf32>
    %102 = vector.shape_cast %101 : vector<1x1x8x128xf32> to vector<8x128xf32>
    %103 = vector.shape_cast %100 : vector<8x128xf32> to vector<1x1x8x128xf32>
    tpu.vector_store %arg6[%c0_68, %c0_69, %c0_70, %c0_71], %103 {strides = array<i32>} : memref<1x1x8x128xf32, #tpu.memory_space<vmem>>, vector<1x1x8x128xf32>,
    return
  }
  func.func @transform_0(%arg0: i32, %arg1: i32) -> (i32, i32) {
    %c0_i32 = arith.constant 0 : i32
    %c0_i32_0 = arith.constant 0 : i32
    %c0_i32_1 = arith.constant 0 : i32
    return %c0_i32, %c0_i32_0 : i32, i32
  }
  func.func @transform_1(%arg0: i32, %arg1: i32) -> (i32, i32) {
    %c0_i32 = arith.constant 0 : i32
    %c0_i32_0 = arith.constant 0 : i32
    %c0_i32_1 = arith.constant 0 : i32
    return %c0_i32, %c0_i32_0 : i32, i32
  }
  func.func @transform_2(%arg0: i32, %arg1: i32) -> (i32, i32, i32, i32) {
    %c0_i32 = arith.constant 0 : i32
    %c0_i32_0 = arith.constant 0 : i32
    %c0_i32_1 = arith.constant 0 : i32
    return %arg0, %c0_i32, %arg1, %c0_i32_0 : i32, i32, i32, i32
  }
  func.func @transform_3(%arg0: i32, %arg1: i32) -> (i32, i32, i32, i32) {
    %c0_i32 = arith.constant 0 : i32
    %c0_i32_0 = arith.constant 0 : i32
    %c0_i32_1 = arith.constant 0 : i32
    return %arg0, %c0_i32, %arg1, %c0_i32_0 : i32, i32, i32, i32
  }
  func.func @transform_4(%arg0: i32, %arg1: i32) -> (i32, i32, i32, i32) {
    %c0_i32 = arith.constant 0 : i32
    %c0_i32_0 = arith.constant 0 : i32
    %c0_i32_1 = arith.constant 0 : i32
    return %arg0, %arg1, %c0_i32, %c0_i32_0 : i32, i32, i32, i32
  }
}

</mosaic_0001>

<llo_original>
// kernel: permute_to_from.1
$region0: #{permute_to_from.1}
  #allocation0 [shape = 'u32[]', space=smem, size = 0x4, offset = 0x4, fixed_abs, tag = 'smem constant byte address 0x4 - core index']
  #allocation1 [shape = 'u32[144,128]{1,0:T(1,128)}', space=vmem, size = 0x12000, scoped, tag = 'internal scratch']
  %s0 = inlined_call_operand.vmem [shape: f32[4,4], index: 0, kind: input, shape index: {}]
  %s1 = inlined_call_operand.vmem [shape: f32[1,4], index: 1, kind: input, shape index: {}]
  %s2 = inlined_call_operand.vmem [shape: f32[2,4,8,128], index: 2, kind: input, shape index: {}]
  %s3 = inlined_call_operand.vmem [shape: f32[2,4,8,128], index: 3, kind: output, shape index: {0}]
  %s4 = inlined_call_operand.vmem [shape: f32[2,1,8,128], index: 4, kind: output, shape index: {1}]
  %5 = xla_tuple %s3, %s4
  %s6 = sld [smem:[#allocation0]]
  $region61: #{permute_to_from.1} parent=0
    _
  %s8 = ssub.s32 1, %s6
  %s9 = scalar_select 0, %s8, %s6
  $region1: #{permute_to_from.1} parent=0
    #allocation2 [shape = 'u8[2048]{0}', space=smem, size = 0x800, scoped, tag = 'input window, operand 0, single buffered']
    #allocation3 [shape = 's32[2]{0}', space=sflag, size = 0x8, scoped, tag = 'scoped memory for permute_to_from.1']
    #allocation4 [shape = 'u8[512]{0}', space=smem, size = 0x200, scoped, tag = 'input window, operand 1, single buffered']
    #allocation5 [shape = 's32[1]{0}', space=sflag, size = 0x4, scoped, tag = 'scoped memory for permute_to_from.1']
    %10 = vsyncpa [#allocation3], 0
    %11 = vsyncpa [#allocation5], 0
    loop: start=0, step=1, limit=4
    $region2: #{permute_to_from.1} parent=1 // loop_pre_header
      _
    $region3: #{permute_to_from.1} parent=1 // loop_header
      %s13 = sphi 0, %s17
      %p14 = scmp.ge.s32.totalorder %s13, 4
      %s20 = sphi 0, %s32
      %s21 = sphi 0, %s28
      %s22 = sphi 0, %s20
      %s23 = sphi 0, %s21
      %s24 = sphi 0, %s22
      %s25 = sphi 0, %s23
      %s33 = sphi 0, %s33
      %s35 = sphi 0, %s33
      %s36 = sphi 0, %s35
      %s50 = sphi 0, %s36
      %s54 = sphi 0, %s54
      %s56 = sphi 0, %s54
      %s57 = sphi 0, %s56
      %s71 = sphi 0, %s57
      %s79 = sphi 0, %s81
      %s82 = sphi 0, %s79
      %s83 = sphi 0, %s82
      %s99 = sphi 0, %s83
      %s107 = sphi 0, %s109
      %s110 = sphi 0, %s107
      %s111 = sphi 0, %s110
      %s127 = sphi 0, %s111
      %s135 = sphi 0, %s137
      %s138 = sphi 0, %s135
      %s139 = sphi 0, %s138
      %s155 = sphi 0, %s139
    $region4: #{permute_to_from.1} parent=1 // loop_header_branch
      %16 = sbr.rel (%p14) target = $region8
    $region5: #{permute_to_from.1} parent=1 // loop_body
      %s18 = ssub.s32 %s13, 1
      %s19 = ssub.s32 %s13, 2
      %s26 = sadd.s32 1, %s21
      %p27 = scmp.ge.s32.totalorder %s26, 1
      %s28 = scalar_select %p27, 0, %s26
      %s29 = sadd.s32 1, %s20
      %s30 = scalar_select %p27, %s29, %s20
      %p31 = scmp.ge.s32.totalorder %s30, 2
      %s32 = scalar_select %p31, 0, %s30
      %s34 = sadd.s32 %s33, 1
      %p37 = scmp.eq.s32.totalorder %s13, 1
      %p38 = scmp.ne.s32.totalorder %s33, %s35
      %p39 = scmp.eq.s32.totalorder %s13, 0
      %p40 = por %p38, %p39
      %p41 = scmp.ne.s32.totalorder %s33, %s35
      %p42 = scmp.eq.s32.totalorder %s18, 1
      %p43 = por %p41, %p42
      %p44 = scmp.ne.s32.totalorder %s35, %s36
      %p45 = scmp.eq.s32.totalorder %s18, 0
      %p46 = por %p44, %p45
      %p47 = scmp.ne.s32.totalorder %s35, %s36
      %p48 = scmp.eq.s32.totalorder %s19, 1
      %p49 = por %p47, %p48
      %p51 = scmp.ne.s32.totalorder %s36, %s50
      %p52 = scmp.eq.s32.totalorder %s19, 0
      %p53 = por %p51, %p52
      %s55 = sadd.s32 %s54, 1
      %p58 = scmp.eq.s32.totalorder %s13, 1
      %p59 = scmp.ne.s32.totalorder %s54, %s56
      %p60 = scmp.eq.s32.totalorder %s13, 0
      %p61 = por %p59, %p60
      %p62 = scmp.ne.s32.totalorder %s54, %s56
      %p63 = scmp.eq.s32.totalorder %s18, 1
      %p64 = por %p62, %p63
      %p65 = scmp.ne.s32.totalorder %s56, %s57
      %p66 = scmp.eq.s32.totalorder %s18, 0
      %p67 = por %p65, %p66
      %p68 = scmp.ne.s32.totalorder %s56, %s57
      %p69 = scmp.eq.s32.totalorder %s19, 1
      %p70 = por %p68, %p69
      %p72 = scmp.ne.s32.totalorder %s57, %s71
      %p73 = scmp.eq.s32.totalorder %s19, 0
      %p74 = por %p72, %p73
      %s75 = ssub.s32 %s20, %s32
      %s76 = ssub.s32 %s21, %s28
      %s77 = sor.u32 %s75, %s76
      %p78 = scmp.eq.s32.totalorder %s77, 0
      %s80 = sadd.s32 %s79, 1
      %s81 = scalar_select %p78, %s79, %s80
      %p84 = pneg %p78
      %p85 = scmp.eq.s32.totalorder %s13, 1
      %p86 = por %p84, %p85
      %p87 = scmp.ne.s32.totalorder %s79, %s82
      %p88 = scmp.eq.s32.totalorder %s13, 0
      %p89 = por %p87, %p88
      %p90 = scmp.ne.s32.totalorder %s79, %s82
      %p91 = scmp.eq.s32.totalorder %s18, 1
      %p92 = por %p90, %p91
      %p93 = scmp.ne.s32.totalorder %s82, %s83
      %p94 = scmp.eq.s32.totalorder %s18, 0
      %p95 = por %p93, %p94
      %p96 = scmp.ne.s32.totalorder %s82, %s83
      %p97 = scmp.eq.s32.totalorder %s19, 1
      %p98 = por %p96, %p97
      %p100 = scmp.ne.s32.totalorder %s83, %s99
      %p101 = scmp.eq.s32.totalorder %s19, 0
      %p102 = por %p100, %p101
      %s103 = ssub.s32 %s20, %s32
      %s104 = ssub.s32 %s21, %s28
      %s105 = sor.u32 %s103, %s104
      %p106 = scmp.eq.s32.totalorder %s105, 0
      %s108 = sadd.s32 %s107, 1
      %s109 = scalar_select %p106, %s107, %s108
      %p112 = pneg %p106
      %p113 = scmp.eq.s32.totalorder %s13, 1
      %p114 = por %p112, %p113
      %p115 = scmp.ne.s32.totalorder %s107, %s110
      %p116 = scmp.eq.s32.totalorder %s13, 0
      %p117 = por %p115, %p116
      %p118 = scmp.ne.s32.totalorder %s107, %s110
      %p119 = scmp.eq.s32.totalorder %s18, 1
      %p120 = por %p118, %p119
      %p121 = scmp.ne.s32.totalorder %s110, %s111
      %p122 = scmp.eq.s32.totalorder %s18, 0
      %p123 = por %p121, %p122
      %p124 = scmp.ne.s32.totalorder %s110, %s111
      %p125 = scmp.eq.s32.totalorder %s19, 1
      %p126 = por %p124, %p125
      %p128 = scmp.ne.s32.totalorder %s111, %s127
      %p129 = scmp.eq.s32.totalorder %s19, 0
      %p130 = por %p128, %p129
      %s131 = ssub.s32 %s20, %s32
      %s132 = ssub.s32 %s21, %s28
      %s133 = sor.u32 %s131, %s132
      %p134 = scmp.eq.s32.totalorder %s133, 0
      %s136 = sadd.s32 %s135, 1
      %s137 = scalar_select %p134, %s135, %s136
      %p140 = pneg %p134
      %p141 = scmp.eq.s32.totalorder %s13, 1
      %p142 = por %p140, %p141
      %p143 = scmp.ne.s32.totalorder %s135, %s138
      %p144 = scmp.eq.s32.totalorder %s13, 0
      %p145 = por %p143, %p144
      %p146 = scmp.ne.s32.totalorder %s135, %s138
      %p147 = scmp.eq.s32.totalorder %s18, 1
      %p148 = por %p146, %p147
      %p149 = scmp.ne.s32.totalorder %s138, %s139
      %p150 = scmp.eq.s32.totalorder %s18, 0
      %p151 = por %p149, %p150
      %p152 = scmp.ne.s32.totalorder %s138, %s139
      %p153 = scmp.eq.s32.totalorder %s19, 1
      %p154 = por %p152, %p153
      %p156 = scmp.ne.s32.totalorder %s139, %s155
      %p157 = scmp.eq.s32.totalorder %s19, 0
      %p158 = por %p156, %p157
      %p159 = scmp.le.s32.totalorder 1, %s13
      %p160 = scmp.lt.s32.totalorder %s13, 3
      %p161 = pnand %p159, %p160
      %p162 = pneg %p161
      // Predicated region
      $region9: #{permute_to_from.1} parent=5 // pred_check
        _
      $region10: #{permute_to_from.1} parent=5 // pred_check_branch
        %164 = sbr.rel (%p161) target = $region12
      $region11: #{permute_to_from.1} parent=5 // pred_region
        %s165 = ssub.s32 %s13, 1
        // Predicated region
        $region13: #{permute_to_from.1} parent=11 // pred_check
          %p166 = pneg %p46
        $region14: #{permute_to_from.1} parent=11 // pred_check_branch
          %168 = sbr.rel (%p166) target = $region16
        $region15: #{permute_to_from.1} parent=11 // pred_region
          %s170 = ssub.s32 64, 64
          %171 = vsyncadd [#allocation3], %s170
          %s173 = sshll.u32 %s0, 4
          %s174 = int_to_ptr.vmem [resolvable:$true] %s173
          %176 = dma.vmem_to_smem %s174, 64, [#allocation2], [#allocation3]
        $region16: #{permute_to_from.1} parent=11 // pred_fallthru
          _
        // Predicated region
        $region17: #{permute_to_from.1} parent=11 // pred_check
          %p177 = pneg %p67
        $region18: #{permute_to_from.1} parent=11 // pred_check_branch
          %179 = sbr.rel (%p177) target = $region20
        $region19: #{permute_to_from.1} parent=11 // pred_region
          %s181 = ssub.s32 16, 16
          %182 = vsyncadd [#allocation5], %s181
          %s184 = sshll.u32 %s1, 4
          %s185 = int_to_ptr.vmem [resolvable:$true] %s184
          %187 = dma.vmem_to_smem %s185, 16, [#allocation4], [#allocation5]
        $region20: #{permute_to_from.1} parent=11 // pred_fallthru
          _
      $region12: #{permute_to_from.1} parent=5 // pred_fallthru
        _
      %p188 = scmp.lt.s32.totalorder %s13, 2
      // Predicated region
      $region21: #{permute_to_from.1} parent=5 // pred_check
        %p189 = pneg %p188
      $region22: #{permute_to_from.1} parent=5 // pred_check_branch
        %191 = sbr.rel (%p189) target = $region24
      $region23: #{permute_to_from.1} parent=5 // pred_region
        // Predicated region
        $region25: #{permute_to_from.1} parent=23 // pred_check
          %p192 = pneg %p89
        $region26: #{permute_to_from.1} parent=23 // pred_check_branch
          %194 = sbr.rel (%p192) target = $region28
        $region27: #{permute_to_from.1} parent=23 // pred_region
          %p195 = scmp.lt.s32.totalorder %s20, 1
          %s196 = scalar_select %p195, %s20, 1
          %p197 = scmp.lt.s32.totalorder %s21, 0
          %s198 = scalar_select %p197, %s21, 0
          %s199 = smul.addr %s196, 4
          %s200 = sadd.s32 %s198, %s199
          %s201 = smul.addr %s200, 8
          %s202 = scalar_lea.vmem %s2, %s201
        $region28: #{permute_to_from.1} parent=23 // pred_fallthru
          _
      $region24: #{permute_to_from.1} parent=5 // pred_fallthru
        _
      %p203 = scmp.le.s32.totalorder 1, %s13
      %p204 = scmp.lt.s32.totalorder %s13, 3
      %p205 = pnand %p203, %p204
      %p206 = pneg %p205
      // Predicated region
      $region29: #{permute_to_from.1} parent=5 // pred_check
        _
      $region30: #{permute_to_from.1} parent=5 // pred_check_branch
        %208 = sbr.rel (%p205) target = $region32
      $region31: #{permute_to_from.1} parent=5 // pred_region
        %s209 = ssub.s32 %s13, 1
        // Predicated region
        $region33: #{permute_to_from.1} parent=31 // pred_check
          %p210 = pneg %p46
        $region34: #{permute_to_from.1} parent=31 // pred_check_branch
          %212 = sbr.rel (%p210) target = $region36
        $region35: #{permute_to_from.1} parent=31 // pred_region
          %213 = dma.done [#allocation3], 64
        $region36: #{permute_to_from.1} parent=31 // pred_fallthru
          _
        // Predicated region
        $region37: #{permute_to_from.1} parent=31 // pred_check
          %p214 = pneg %p67
        $region38: #{permute_to_from.1} parent=31 // pred_check_branch
          %216 = sbr.rel (%p214) target = $region40
        $region39: #{permute_to_from.1} parent=31 // pred_region
          %217 = dma.done [#allocation5], 16
        $region40: #{permute_to_from.1} parent=31 // pred_fallthru
          _
        %218 = sfence
        %p219 = pneg %p46
        %p220 = pneg %p43
        %p221 = pneg %p67
        %p222 = pneg %p64
        %p223 = scmp.lt.s32.totalorder %s22, 1
        %s224 = scalar_select %p223, %s22, 1
        %p225 = scmp.lt.s32.totalorder %s23, 0
        %s226 = scalar_select %p225, %s23, 0
        %s227 = smul.addr %s224, 4
        %s228 = sadd.s32 %s226, %s227
        %s229 = smul.addr %s228, 8
        %s230 = scalar_lea.vmem %s2, %s229
        %p231 = pneg %p95
        %p232 = pneg %p92
        %p233 = pneg %p123
        %p234 = pneg %p120
        %p235 = scmp.lt.s32.totalorder %s22, 1
        %s236 = scalar_select %p235, %s22, 1
        %p237 = scmp.lt.s32.totalorder %s23, 0
        %s238 = scalar_select %p237, %s23, 0
        %s239 = smul.addr %s236, 4
        %s240 = sadd.s32 %s238, %s239
        %s241 = smul.addr %s240, 8
        %s242 = scalar_lea.vmem %s3, %s241
        %p243 = pneg %p151
        %p244 = pneg %p148
        %p245 = scmp.lt.s32.totalorder %s22, 1
        %s246 = scalar_select %p245, %s22, 1
        %p247 = scmp.lt.s32.totalorder %s23, 0
        %s248 = scalar_select %p247, %s23, 0
        %s249 = sadd.s32 %s248, %s246
        %s250 = smul.addr %s249, 8
        %s251 = scalar_lea.vmem %s4, %s250
        %p252 = scmp.lt.s32.totalorder %s22, 1
        %s253 = scalar_select %p252, %s22, 1
        %p254 = scmp.lt.s32.totalorder %s23, 0
        %s255 = scalar_select %p254, %s23, 0
        %s256 = smul.addr %s253, 4
        %s257 = sadd.s32 %s255, %s256
        %s258 = smul.addr %s257, 8
        %s259 = scalar_lea.vmem %s2, %s258
        %p260 = scmp.lt.s32.totalorder %s22, 1
        %s261 = scalar_select %p260, %s22, 1
        %p262 = scmp.lt.s32.totalorder %s23, 0
        %s263 = scalar_select %p262, %s23, 0
        %s264 = smul.addr %s261, 4
        %s265 = sadd.s32 %s263, %s264
        %s266 = smul.addr %s265, 8
        %s267 = scalar_lea.vmem %s3, %s266
        %p268 = scmp.lt.s32.totalorder %s22, 1
        %s269 = scalar_select %p268, %s22, 1
        %p270 = scmp.lt.s32.totalorder %s23, 0
        %s271 = scalar_select %p270, %s23, 0
        %s272 = sadd.s32 %s271, %s269
        %s273 = smul.addr %s272, 8
        %s274 = scalar_lea.vmem %s4, %s273
        %s275 = sld [smem:[#allocation2]]
        %s276 = sld [smem:[#allocation2 + $0x1]]
        %s277 = sld [smem:[#allocation2 + $0x2]]
        %s278 = sld [smem:[#allocation2 + $0x3]]
        %s279 = sld [smem:[#allocation2 + $0x80]]
        %s280 = sld [smem:[#allocation2 + $0x81]]
        %s281 = sld [smem:[#allocation2 + $0x82]]
        %s282 = sld [smem:[#allocation2 + $0x83]]
        %s283 = sld [smem:[#allocation2 + $0x100]]
        %s284 = sld [smem:[#allocation2 + $0x101]]
        %s285 = sld [smem:[#allocation2 + $0x102]]
        %s286 = sld [smem:[#allocation2 + $0x103]]
        %s287 = sld [smem:[#allocation2 + $0x180]]
        %s288 = sld [smem:[#allocation2 + $0x181]]
        %s289 = sld [smem:[#allocation2 + $0x182]]
        %s290 = sld [smem:[#allocation2 + $0x183]]
        %s291 = sld [smem:[#allocation4]]
        %s292 = sld [smem:[#allocation4 + $0x1]]
        %s293 = sld [smem:[#allocation4 + $0x2]]
        %s294 = sld [smem:[#allocation4 + $0x3]]
        %v295 = vld [vmem:[%s259] sm:$0xff]
        %s296 = scalar_lea.vmem %s259, 8
        %v297 = vld [vmem:[%s296] sm:$0xff]
        %s298 = scalar_lea.vmem %s259, 16
        %v299 = vld [vmem:[%s298] sm:$0xff]
        %s300 = scalar_lea.vmem %s259, 24
        %v301 = vld [vmem:[%s300] sm:$0xff]
        %v302 = vstv %s275
        %v303 = vmul.f32 %v295, %v302
        %v304 = vstv %s279
        %v305 = vmul.f32 %v297, %v304
        %v306 = vadd.f32 %v303, %v305
        %v307 = vstv %s283
        %v308 = vmul.f32 %v299, %v307
        %v309 = vadd.f32 %v306, %v308
        %v310 = vstv %s287
        %v311 = vmul.f32 %v301, %v310
        %v312 = vadd.f32 %v309, %v311
        %v313 = vstv %s291
        %v314 = vadd.f32 %v312, %v313
        %315 = vst [vmem:[%s267] sm:$0xff] %v314
        %v316 = vmul.f32 %v314, %v314
        %v317 = vadd.f32 %v316, 0.0
        %v318 = vstv %s276
        %v319 = vmul.f32 %v295, %v318
        %v320 = vstv %s280
        %v321 = vmul.f32 %v297, %v320
        %v322 = vadd.f32 %v319, %v321
        %v323 = vstv %s284
        %v324 = vmul.f32 %v299, %v323
        %v325 = vadd.f32 %v322, %v324
        %v326 = vstv %s288
        %v327 = vmul.f32 %v301, %v326
        %v328 = vadd.f32 %v325, %v327
        %v329 = vstv %s292
        %v330 = vadd.f32 %v328, %v329
        %s331 = scalar_lea.vmem %s267, 8
        %332 = vst [vmem:[%s331] sm:$0xff] %v330
        %v333 = vmul.f32 %v330, %v330
        %v334 = vadd.f32 %v317, %v333
        %v335 = vstv %s277
        %v336 = vmul.f32 %v295, %v335
        %v337 = vstv %s281
        %v338 = vmul.f32 %v297, %v337
        %v339 = vadd.f32 %v336, %v338
        %v340 = vstv %s285
        %v341 = vmul.f32 %v299, %v340
        %v342 = vadd.f32 %v339, %v341
        %v343 = vstv %s289
        %v344 = vmul.f32 %v301, %v343
        %v345 = vadd.f32 %v342, %v344
        %v346 = vstv %s293
        %v347 = vadd.f32 %v345, %v346
        %s348 = scalar_lea.vmem %s267, 16
        %349 = vst [vmem:[%s348] sm:$0xff] %v347
        %v350 = vmul.f32 %v347, %v347
        %v351 = vadd.f32 %v334, %v350
        %v352 = vstv %s278
        %v353 = vmul.f32 %v295, %v352
        %v354 = vstv %s282
        %v355 = vmul.f32 %v297, %v354
        %v356 = vadd.f32 %v353, %v355
        %v357 = vstv %s286
        %v358 = vmul.f32 %v299, %v357
        %v359 = vadd.f32 %v356, %v358
        %v360 = vstv %s290
        %v361 = vmul.f32 %v301, %v360
        %v362 = vadd.f32 %v359, %v361
        %v363 = vstv %s294
        %v364 = vadd.f32 %v362, %v363
        %s365 = scalar_lea.vmem %s267, 24
        %366 = vst [vmem:[%s365] sm:$0xff] %v364
        %v367 = vmul.f32 %v364, %v364
        %v368 = vadd.f32 %v351, %v367
        %369 = vst [vmem:[%s274] sm:$0xff] %v368
        %p370 = scmp.lt.s32.totalorder %s22, 1
        %s371 = scalar_select %p370, %s22, 1
        %p372 = scmp.lt.s32.totalorder %s23, 0
        %s373 = scalar_select %p372, %s23, 0
        %s374 = smul.addr %s371, 4
        %s375 = sadd.s32 %s373, %s374
        %s376 = smul.addr %s375, 8
        %s377 = scalar_lea.vmem %s3, %s376
        %p378 = scmp.lt.s32.totalorder %s22, 1
        %s379 = scalar_select %p378, %s22, 1
        %p380 = scmp.lt.s32.totalorder %s23, 0
        %s381 = scalar_select %p380, %s23, 0
        %s382 = sadd.s32 %s381, %s379
        %s383 = smul.addr %s382, 8
        %s384 = scalar_lea.vmem %s4, %s383
        // Predicated region
        $region41: #{permute_to_from.1} parent=31 // pred_check
          %p385 = pneg %p120
        $region42: #{permute_to_from.1} parent=31 // pred_check_branch
          %387 = sbr.rel (%p385) target = $region44
        $region43: #{permute_to_from.1} parent=31 // pred_region
          _
        $region44: #{permute_to_from.1} parent=31 // pred_fallthru
          _
        // Predicated region
        $region45: #{permute_to_from.1} parent=31 // pred_check
          %p388 = pneg %p148
        $region46: #{permute_to_from.1} parent=31 // pred_check_branch
          %390 = sbr.rel (%p388) target = $region48
        $region47: #{permute_to_from.1} parent=31 // pred_region
          _
        $region48: #{permute_to_from.1} parent=31 // pred_fallthru
          _
      $region32: #{permute_to_from.1} parent=5 // pred_fallthru
        _
      %p391 = scmp.le.s32.totalorder 2, %s13
      // Predicated region
      $region49: #{permute_to_from.1} parent=5 // pred_check
        %p392 = pneg %p391
      $region50: #{permute_to_from.1} parent=5 // pred_check_branch
        %394 = sbr.rel (%p392) target = $region52
      $region51: #{permute_to_from.1} parent=5 // pred_region
        %s395 = ssub.s32 %s13, 2
        // Predicated region
        $region53: #{permute_to_from.1} parent=51 // pred_check
          %p396 = pneg %p126
        $region54: #{permute_to_from.1} parent=51 // pred_check_branch
          %398 = sbr.rel (%p396) target = $region56
        $region55: #{permute_to_from.1} parent=51 // pred_region
          %p399 = scmp.lt.s32.totalorder %s24, 1
          %s400 = scalar_select %p399, %s24, 1
          %p401 = scmp.lt.s32.totalorder %s25, 0
          %s402 = scalar_select %p401, %s25, 0
          %s403 = smul.addr %s400, 4
          %s404 = sadd.s32 %s402, %s403
          %s405 = smul.addr %s404, 8
          %s406 = scalar_lea.vmem %s3, %s405
        $region56: #{permute_to_from.1} parent=51 // pred_fallthru
          _
        // Predicated region
        $region57: #{permute_to_from.1} parent=51 // pred_check
          %p407 = pneg %p154
        $region58: #{permute_to_from.1} parent=51 // pred_check_branch
          %409 = sbr.rel (%p407) target = $region60
        $region59: #{permute_to_from.1} parent=51 // pred_region
          %p410 = scmp.lt.s32.totalorder %s24, 1
          %s411 = scalar_select %p410, %s24, 1
          %p412 = scmp.lt.s32.totalorder %s25, 0
          %s413 = scalar_select %p412, %s25, 0
          %s414 = sadd.s32 %s413, %s411
          %s415 = smul.addr %s414, 8
          %s416 = scalar_lea.vmem %s4, %s415
        $region60: #{permute_to_from.1} parent=51 // pred_fallthru
          _
      $region52: #{permute_to_from.1} parent=5 // pred_fallthru
        _
    $region6: #{permute_to_from.1} parent=1 // loop_footer
      %s17 = sadd.s32 1, %s13
    $region7: #{permute_to_from.1} parent=1 // loop_footer_branch
      %12 = sbr.rel target = $region3
    $region8: #{permute_to_from.1} parent=1 // loop_exit
      _
    %417 = vsyncpa [#allocation3], 1
    %s418 = scalar_lea.sflag [#allocation3], 1
    %419 = vsyncpa %s418, 1
    %420 = vsyncpa [#allocation5], 1

</llo_original>
